<compile_context>
chip_gen: v7x
topology: tpu7x:2x2x1
jax: 0.10.0
libtpu: 0.0.40
codegen_flags: <defaults>
</compile_context>

<pallas_src>
import functools
from typing import NamedTuple

import jax
import jax.numpy as jnp
from jax import lax
from jax.experimental import pallas as pl
from jax.experimental.pallas import tpu as pltpu


_LANE = 128                          # lane width (last-dim vreg width)
_VMEM_SOFT_CAP = 40 * 1024 * 1024    # keep resident weights + tiles well under v7x 64 MiB


def _round_up(x: int, m: int) -> int:
    return (x + m - 1) // m * m


def _cdiv(a: int, b: int) -> int:
    return -(-a // b)


class MLPMeta(NamedTuple):
    num_layers: int
    input_dim: int
    out_dim: int


# ----------------------------------------------------------------------------- kernel
def _fused_mlp_kernel(x_ref, w0_ref, b0_ref, *rest, num_tail, unroll_tail):
    """All Linear+ReLU layers fused; the activation stays resident in VMEM/vregs.

    x_ref : [tm, din_pad]                      batch tile (compute dtype)
    w0_ref: [din_pad, dout_pad]                first-layer weight (resident, Buffered(1))
    b0_ref: [1, dout_pad]
    wt_ref: [num_tail, dout_pad, dout_pad]     stacked tail weights (resident)
    bt_ref: [num_tail, 1, dout_pad]
    o_ref : [tm, dout_pad]
    """
    if num_tail > 0:
        wt_ref, bt_ref, o_ref = rest
    else:
        (o_ref,) = rest
    compute_dtype = x_ref.dtype

    def layer(h, w, b):
        # MXU matmul with f32 accumulation; bias + ReLU in f32; cast once per layer.
        acc = jnp.dot(h, w, preferred_element_type=jnp.float32)
        acc = acc + b.astype(jnp.float32)
        return jnp.maximum(acc, 0.0).astype(compute_dtype)

    h = layer(x_ref[...], w0_ref[...], b0_ref[...])

    if num_tail > 0:
        if unroll_tail:
            for l in range(num_tail):          # small L: unrolled for LLO visibility
                h = layer(h, wt_ref[l], bt_ref[l])
        else:                                  # deep MLP: bound code size / live ranges
            h = lax.fori_loop(0, num_tail,
                              lambda l, hh: layer(hh, wt_ref[l], bt_ref[l]), h)

    o_ref[...] = h.astype(o_ref.dtype)


# ----------------------------------------------------------------- one-time weight prepack
def prepack_mlp_params(params, compute_dtype=None):
    """Pads/stacks weights ONCE at init (not per forward call).

    params: list of (w_t [Din, Dout], b [Dout]) with Din=input_dim for layer 0 and
            Din=Dout=out_dim for all remaining layers (the MTAFM MLP structure).
    compute_dtype: e.g. jnp.bfloat16 for v6e/v7x MXU throughput (f32 accumulation kept).
    """
    num_layers = len(params)
    w0, b0 = params[0]
    input_dim, out_dim = w0.shape
    if compute_dtype is None:
        compute_dtype = w0.dtype

    din_pad = _round_up(input_dim, _LANE)
    dout_pad = _round_up(out_dim, _LANE)

    # Zero padding is mathematically inert: padded input features hit zero weight rows,
    # padded output columns get zero weights + zero bias -> relu(0)=0, and stay zero
    # through the tail layers.
    w0_p = jnp.zeros((din_pad, dout_pad), compute_dtype).at[:input_dim, :out_dim].set(
        w0.astype(compute_dtype))
    b0_p = jnp.zeros((1, dout_pad), compute_dtype).at[0, :out_dim].set(
        b0.astype(compute_dtype))

    num_tail = num_layers - 1
    if num_tail > 0:
        wt_p = jnp.zeros((num_tail, dout_pad, dout_pad), compute_dtype)
        bt_p = jnp.zeros((num_tail, 1, dout_pad), compute_dtype)
        for l, (w, b) in enumerate(params[1:]):
            assert w.shape == (out_dim, out_dim), "tail layers must be out_dim -> out_dim"
            wt_p = wt_p.at[l, :out_dim, :out_dim].set(w.astype(compute_dtype))
            bt_p = bt_p.at[l, 0, :out_dim].set(b.astype(compute_dtype))
    else:
        wt_p = bt_p = None

    packed = (w0_p, b0_p, wt_p, bt_p)
    meta = MLPMeta(num_layers=num_layers, input_dim=input_dim, out_dim=out_dim)
    return packed, meta


# ------------------------------------------------------------------------ tiling helpers
def _vmem_bytes_estimate(tm, din_pad, dout_pad, num_tail, itemsize):
    weights = (din_pad * dout_pad + dout_pad
               + num_tail * (dout_pad * dout_pad + dout_pad)) * itemsize  # Buffered(1): 1 copy
    io_tiles = 2 * tm * (din_pad + dout_pad) * itemsize                   # double-buffered x / out
    staging = 2 * tm * max(din_pad, dout_pad) * 4                         # f32 activation headroom
    return weights + io_tiles + staging


def _pick_batch_tile(B, din_pad, dout_pad, num_tail, itemsize, sublane):
    # >= 2 tiles so both v7x TensorCores get work on the "parallel" axis (one extra
    # ~0.35us step on single-TC chips is negligible); <= 512 rows per tile to fill the
    # MXU and amortize per-step overhead; sublane-aligned; shrink if over VMEM budget.
    n_tiles = max(2, _cdiv(B, 512))
    tm = min(512, _round_up(max(_cdiv(B, n_tiles), 1), sublane))
    tm = max(tm, sublane)
    while tm > sublane and _vmem_bytes_estimate(tm, din_pad, dout_pad,
                                                num_tail, itemsize) > _VMEM_SOFT_CAP:
        tm = max(sublane, _round_up(tm // 2, sublane))
    b_pad = _round_up(B, tm)
    return tm, b_pad


# ------------------------------------------------------------------------------- forward
def mlp_forward(x, packed, *, meta):
    """Fused MLP forward. x: [..., input_dim]; packed: output of prepack_mlp_params."""
    w0_p, b0_p, wt_p, bt_p = packed
    compute_dtype = w0_p.dtype
    itemsize = jnp.dtype(compute_dtype).itemsize
    din_pad, dout_pad = w0_p.shape
    num_tail = meta.num_layers - 1

    orig_shape = x.shape
    x2 = x.reshape(-1, meta.input_dim)           # nn.Linear semantics for N-D inputs
    B = x2.shape[0]

    sublane = 16 if itemsize < 4 else 8          # bf16 packs 16 rows per sublane group
    tm, b_pad = _pick_batch_tile(B, din_pad, dout_pad, num_tail, itemsize, sublane)

    # Lane/sublane-aligned activation pad (no-op when already aligned).
    if (B, meta.input_dim) == (b_pad, din_pad) and x2.dtype == compute_dtype:
        x_p = x2
    else:
        x_p = jnp.zeros((b_pad, din_pad), compute_dtype).at[:B, :meta.input_dim].set(
            x2.astype(compute_dtype))

    resident = dict(pipeline_mode=pl.Buffered(1))    # constant index_map -> single buffer
    in_specs = [
        pl.BlockSpec((tm, din_pad), lambda i: (i, 0)),
        pl.BlockSpec((din_pad, dout_pad), lambda i: (0, 0), **resident),
        pl.BlockSpec((1, dout_pad), lambda i: (0, 0), **resident),
    ]
    args = [x_p, w0_p, b0_p]
    if num_tail > 0:
        in_specs += [
            pl.BlockSpec((num_tail, dout_pad, dout_pad), lambda i: (0, 0, 0), **resident),
            pl.BlockSpec((num_tail, 1, dout_pad), lambda i: (0, 0, 0), **resident),
        ]
        args += [wt_p, bt_p]

    weight_bytes = (din_pad * dout_pad + dout_pad
                    + num_tail * (dout_pad * dout_pad + dout_pad)) * itemsize
    flops = 2 * b_pad * (din_pad * dout_pad + num_tail * dout_pad * dout_pad)
    bytes_accessed = weight_bytes + b_pad * (din_pad + dout_pad) * itemsize
    vmem_limit = _vmem_bytes_estimate(tm, din_pad, dout_pad, num_tail, itemsize)
    vmem_limit = min(max(int(vmem_limit * 1.25) + (2 << 20), 16 << 20), 96 << 20)

    # TODO(synk): when the resident weight footprint approaches the VMEM cap, add an
    # "arbitrary" feature-tiling grid axis (K/N blocks + f32 VMEM accumulator) instead
    # of keeping all layers fully resident.
    out_p = pl.pallas_call(
        functools.partial(_fused_mlp_kernel, num_tail=num_tail,
                          unroll_tail=num_tail < 8),
        out_shape=jax.ShapeDtypeStruct((b_pad, dout_pad), compute_dtype),
        grid_spec=pltpu.PrefetchScalarGridSpec(
            num_scalar_prefetch=0,
            grid=(b_pad // tm,),
            in_specs=in_specs,
            out_specs=pl.BlockSpec((tm, dout_pad), lambda i: (i, 0)),
        ),
        compiler_params=pltpu.CompilerParams(
            dimension_semantics=("parallel",),
            vmem_limit_bytes=vmem_limit,
        ),
        cost_estimate=pl.CostEstimate(flops=flops, transcendentals=0,
                                      bytes_accessed=bytes_accessed),
    )(*args)

    out = out_p[:B, :meta.out_dim].astype(x.dtype)
    return out.reshape(orig_shape[:-1] + (meta.out_dim,))


# -------------------------------------------------------------------------- init / reference
def init_mlp_params(key, input_dim, mlp_level, out_dim, dtype=jnp.float32):
    """Deterministic init mirroring nn.Linear(in, out) per level (weights pre-transposed
    as [Din, Dout])."""
    params = []
    in_dim = input_dim
    for _ in range(mlp_level):
        key, kw, kb = jax.random.split(key, 3)
        bound = 1.0 / jnp.sqrt(jnp.asarray(in_dim, dtype))
        w_t = jax.random.uniform(kw, (in_dim, out_dim), dtype, -bound, bound)
        b = jax.random.uniform(kb, (out_dim,), dtype, -bound, bound)
        params.append((w_t, b))
        in_dim = out_dim
    return params


def mlp_reference(x, params):
    """Plain-JAX reference for sanity checking."""
    for w_t, b in params:
        x = jnp.maximum(x @ w_t + b, 0.0)
    return x


if __name__ == "__main__":
    key = jax.random.PRNGKey(0)
    key, kx, kx2, kp = jax.random.split(key, 4)

    batch = 8
    input_dim = 16
    out_dim = 32
    mlp_level = 3

    x = jax.random.normal(kx, (batch, input_dim), jnp.float32)
    params = init_mlp_params(kp, input_dim, mlp_level, out_dim)
    ref = mlp_reference(x, params)

    # f32 path (matches the PyTorch module's default dtype).
    packed, meta = prepack_mlp_params(params)
    fwd = jax.jit(functools.partial(mlp_forward, meta=meta))
    out = jax.block_until_ready(fwd(x, packed))
    assert out.shape == (batch, out_dim)
    assert jnp.allclose(out, ref, atol=1e-5, rtol=1e-5), "f32 mismatch vs reference"

    # Multi-tile grid path (exercises batch tiling + row padding).
    x_big = jax.random.normal(kx2, (40, input_dim), jnp.float32)
    out_big = jax.block_until_ready(jax.jit(functools.partial(mlp_forward, meta=meta))(
        x_big, packed))
    assert out_big.shape == (40, out_dim)
    assert jnp.allclose(out_big, mlp_reference(x_big, params), atol=1e-5, rtol=1e-5), \
        "multi-tile mismatch vs reference"

    # bf16-weights / f32-accumulate path (v6e/v7x MXU-friendly).
    packed_bf16, meta_bf16 = prepack_mlp_params(params, compute_dtype=jnp.bfloat16)
    fwd_bf16 = jax.jit(functools.partial(mlp_forward, meta=meta_bf16))
    out_bf16 = jax.block_until_ready(fwd_bf16(x, packed_bf16))
    assert out_bf16.shape == (batch, out_dim)
    assert jnp.allclose(out_bf16.astype(jnp.float32), ref, atol=1e-1, rtol=5e-2), \
        "bf16 mismatch vs reference"

    print("KERNEL_OK")
</pallas_src>

<mosaic_0001>
module attributes {stable_mosaic.version = 11 : i64} {
  func.func @_fused_mlp_kernel(%arg0: i32, %arg1: memref<8x128xf32, #tpu.memory_space<vmem>>, %arg2: memref<128x128xf32, #tpu.memory_space<vmem>>, %arg3: memref<1x128xf32, #tpu.memory_space<vmem>>, %arg4: memref<2x128x128xf32, #tpu.memory_space<vmem>>, %arg5: memref<2x1x128xf32, #tpu.memory_space<vmem>>, %arg6: memref<8x128xf32, #tpu.memory_space<vmem>>) attributes {dimension_semantics = [#tpu.dimension_semantics<parallel>], iteration_bounds = array<i64: 1>, scalar_prefetch = 0 : i64, scratch_operands = 0 : i64, tpu.core_type = #tpu.core_type<tc>, window_params = [{transform_indices = @transform_0, window_bounds = array<i64: 8, 128>}, {pipeline_mode = #tpu.pipeline_mode<synchronous>, transform_indices = @transform_1, window_bounds = array<i64: 128, 128>}, {pipeline_mode = #tpu.pipeline_mode<synchronous>, transform_indices = @transform_2, window_bounds = array<i64: 1, 128>}, {pipeline_mode = #tpu.pipeline_mode<synchronous>, transform_indices = @transform_3, window_bounds = array<i64: 2, 128, 128>}, {pipeline_mode = #tpu.pipeline_mode<synchronous>, transform_indices = @transform_4, window_bounds = array<i64: 2, 1, 128>}, {transform_indices = @transform_5, window_bounds = array<i64: 8, 128>}]} {
    %c0 = arith.constant 0 : index
    %c0_0 = arith.constant 0 : index
    %0 = vector.load %arg1[%c0, %c0_0] : memref<8x128xf32, #tpu.memory_space<vmem>>, vector<8x128xf32>
    %c0_1 = arith.constant 0 : index
    %c0_2 = arith.constant 0 : index
    %1 = vector.load %arg2[%c0_1, %c0_2] : memref<128x128xf32, #tpu.memory_space<vmem>>, vector<128x128xf32>
    %c0_3 = arith.constant 0 : index
    %c0_4 = arith.constant 0 : index
    %2 = vector.load %arg3[%c0_3, %c0_4] : memref<1x128xf32, #tpu.memory_space<vmem>>, vector<1x128xf32>
    %cst = arith.constant dense<0.000000e+00> : vector<8x128xf32>
    %3 = tpu.matmul %0, %1, %cst {dimension_numbers = #tpu.dot_dimension_numbers<[1], [0], [0], [1], [0, 0, 1, 1], [], []>} : vector<8x128xf32>, vector<128x128xf32>, vector<8x128xf32> -> vector<8x128xf32>
    %4 = vector.broadcast %2 : vector<1x128xf32> to vector<8x128xf32>
    %5 = arith.addf %3, %4 : vector<8x128xf32>
    %cst_5 = arith.constant 0.000000e+00 : f32
    %6 = vector.broadcast %cst_5 : f32 to vector<8x128xf32>
    %7 = arith.maximumf %5, %6 : vector<8x128xf32>
    %c0_6 = arith.constant 0 : index
    %c0_7 = arith.constant 0 : index
    %c0_8 = arith.constant 0 : index
    %8 = vector.load %arg4[%c0_6, %c0_7, %c0_8] : memref<2x128x128xf32, #tpu.memory_space<vmem>>, vector<1x128x128xf32>
    %9 = vector.shape_cast %8 : vector<1x128x128xf32> to vector<128x128xf32>
    %c0_9 = arith.constant 0 : index
    %c0_10 = arith.constant 0 : index
    %c0_11 = arith.constant 0 : index
    %10 = vector.load %arg5[%c0_9, %c0_10, %c0_11] : memref<2x1x128xf32, #tpu.memory_space<vmem>>, vector<1x1x128xf32>
    %11 = vector.shape_cast %10 : vector<1x1x128xf32> to vector<1x128xf32>
    %cst_12 = arith.constant dense<0.000000e+00> : vector<8x128xf32>
    %12 = tpu.matmul %7, %9, %cst_12 {dimension_numbers = #tpu.dot_dimension_numbers<[1], [0], [0], [1], [0, 0, 1, 1], [], []>} : vector<8x128xf32>, vector<128x128xf32>, vector<8x128xf32> -> vector<8x128xf32>
    %13 = vector.broadcast %11 : vector<1x128xf32> to vector<8x128xf32>
    %14 = arith.addf %12, %13 : vector<8x128xf32>
    %cst_13 = arith.constant 0.000000e+00 : f32
    %15 = vector.broadcast %cst_13 : f32 to vector<8x128xf32>
    %16 = arith.maximumf %14, %15 : vector<8x128xf32>
    %c1 = arith.constant 1 : index
    %c0_14 = arith.constant 0 : index
    %c0_15 = arith.constant 0 : index
    %17 = vector.load %arg4[%c1, %c0_14, %c0_15] : memref<2x128x128xf32, #tpu.memory_space<vmem>>, vector<1x128x128xf32>
    %18 = vector.shape_cast %17 : vector<1x128x128xf32> to vector<128x128xf32>
    %c1_16 = arith.constant 1 : index
    %c0_17 = arith.constant 0 : index
    %c0_18 = arith.constant 0 : index
    %19 = vector.load %arg5[%c1_16, %c0_17, %c0_18] : memref<2x1x128xf32, #tpu.memory_space<vmem>>, vector<1x1x128xf32>
    %20 = vector.shape_cast %19 : vector<1x1x128xf32> to vector<1x128xf32>
    %cst_19 = arith.constant dense<0.000000e+00> : vector<8x128xf32>
    %21 = tpu.matmul %16, %18, %cst_19 {dimension_numbers = #tpu.dot_dimension_numbers<[1], [0], [0], [1], [0, 0, 1, 1], [], []>} : vector<8x128xf32>, vector<128x128xf32>, vector<8x128xf32> -> vector<8x128xf32>
    %22 = vector.broadcast %20 : vector<1x128xf32> to vector<8x128xf32>
    %23 = arith.addf %21, %22 : vector<8x128xf32>
    %cst_20 = arith.constant 0.000000e+00 : f32
    %24 = vector.broadcast %cst_20 : f32 to vector<8x128xf32>
    %25 = arith.maximumf %23, %24 : vector<8x128xf32>
    %c0_21 = arith.constant 0 : index
    %c0_22 = arith.constant 0 : index
    %26 = vector.load %arg6[%c0_21, %c0_22] : memref<8x128xf32, #tpu.memory_space<vmem>>, vector<8x128xf32>
    tpu.vector_store %arg6[%c0_21, %c0_22], %25 {strides = array<i32>} : memref<8x128xf32, #tpu.memory_space<vmem>>, vector<8x128xf32>,
    return
  }
  func.func @transform_0(%arg0: i32) -> (i32, i32) {
    %c0_i32 = arith.constant 0 : i32
    %c0_i32_0 = arith.constant 0 : i32
    return %arg0, %c0_i32 : i32, i32
  }
  func.func @transform_1(%arg0: i32) -> (i32, i32) {
    %c0_i32 = arith.constant 0 : i32
    %c0_i32_0 = arith.constant 0 : i32
    %c0_i32_1 = arith.constant 0 : i32
    return %c0_i32, %c0_i32_0 : i32, i32
  }
  func.func @transform_2(%arg0: i32) -> (i32, i32) {
    %c0_i32 = arith.constant 0 : i32
    %c0_i32_0 = arith.constant 0 : i32
    %c0_i32_1 = arith.constant 0 : i32
    return %c0_i32, %c0_i32_0 : i32, i32
  }
  func.func @transform_3(%arg0: i32) -> (i32, i32, i32) {
    %c0_i32 = arith.constant 0 : i32
    %c0_i32_0 = arith.constant 0 : i32
    %c0_i32_1 = arith.constant 0 : i32
    %c0_i32_2 = arith.constant 0 : i32
    return %c0_i32, %c0_i32_0, %c0_i32_1 : i32, i32, i32
  }
  func.func @transform_4(%arg0: i32) -> (i32, i32, i32) {
    %c0_i32 = arith.constant 0 : i32
    %c0_i32_0 = arith.constant 0 : i32
    %c0_i32_1 = arith.constant 0 : i32
    %c0_i32_2 = arith.constant 0 : i32
    return %c0_i32, %c0_i32_0, %c0_i32_1 : i32, i32, i32
  }
  func.func @transform_5(%arg0: i32) -> (i32, i32) {
    %c0_i32 = arith.constant 0 : i32
    %c0_i32_0 = arith.constant 0 : i32
    return %arg0, %c0_i32 : i32, i32
  }
}

</mosaic_0001>

<llo_original>
// kernel: mlp_forward.1
$region0: #{mlp_forward.1}
  #allocation0 [shape = 'u32[]', space=smem, size = 0x4, offset = 0x4, fixed_abs, tag = 'smem constant byte address 0x4 - core index']
  #allocation1 [shape = 'u32[144,128]{1,0:T(1,128)}', space=vmem, size = 0x12000, scoped, tag = 'internal scratch']
  %s0 = inlined_call_operand.vmem [shape: f32[8,128], index: 0, kind: input, shape index: {}]
  %s1 = inlined_call_operand.hbm [shape: f32[128,128], index: 1, kind: input, shape index: {}]
  %s2 = inlined_call_operand.vmem [shape: f32[1,128], index: 2, kind: input, shape index: {}]
  %s3 = inlined_call_operand.hbm [shape: f32[2,128,128], index: 3, kind: input, shape index: {}]
  %s4 = inlined_call_operand.vmem [shape: f32[2,1,128], index: 4, kind: input, shape index: {}]
  %s5 = inlined_call_operand.hbm [shape: f32[8,128], index: 5, kind: output, shape index: {}]
  %s6 = sld [smem:[#allocation0]]
  $region38: #{mlp_forward.1} parent=0
    _
  %s8 = ssub.s32 1, %s6
  %s9 = scalar_select 0, %s8, %s6
  $region1: #{mlp_forward.1} parent=0
    #allocation2 [shape = 'u8[65536]{0}', space=vmem, size = 0x10000, scoped, tag = 'input window, operand 1, single buffered']
    #allocation3 [shape = 's32[1]{0}', space=sflag, size = 0x4, scoped, tag = 'scoped memory for mlp_forward.1']
    #allocation4 [shape = 's32[1]{0}', space=sflag, size = 0x4, scoped, tag = 'scoped memory for mlp_forward.1']
    #allocation5 [shape = 'u8[131072]{0}', space=vmem, size = 0x20000, scoped, tag = 'input window, operand 3, single buffered']
    #allocation6 [shape = 's32[1]{0}', space=sflag, size = 0x4, scoped, tag = 'scoped memory for mlp_forward.1']
    #allocation7 [shape = 'u8[4096]{0}', space=vmem, size = 0x1000, scoped, tag = 'output window, operand 0, single buffered']
    %10 = vsyncpa [#allocation3], 0
    %11 = vsyncpa [#allocation6], 0
    %12 = vsyncpa [#allocation4], 0
    // Predicated region
    $region2: #{mlp_forward.1} parent=1 // pred_check
      _
    $region3: #{mlp_forward.1} parent=1 // pred_check_branch
      %14 = sbr.rel (0) target = $region5
    $region4: #{mlp_forward.1} parent=1 // pred_region
      _
    $region5: #{mlp_forward.1} parent=1 // pred_fallthru
      _
    // Predicated region
    $region6: #{mlp_forward.1} parent=1 // pred_check
      _
    $region7: #{mlp_forward.1} parent=1 // pred_check_branch
      %16 = sbr.rel (0) target = $region9
    $region8: #{mlp_forward.1} parent=1 // pred_region
      %s18 = ssub.s32 2048, 2048
      %19 = vsyncadd [#allocation3], %s18
      %s20 = sshll.u32 [#allocation2], 4
      %s21 = int_to_ptr.vmem [resolvable:$true] %s20
      %26 = dma.hbm_to_vmem [thread:$0]  %s1, 2048, %s21, [#allocation3], 128, 128, 8
    $region9: #{mlp_forward.1} parent=1 // pred_fallthru
      _
    // Predicated region
    $region10: #{mlp_forward.1} parent=1 // pred_check
      _
    $region11: #{mlp_forward.1} parent=1 // pred_check_branch
      %28 = sbr.rel (0) target = $region13
    $region12: #{mlp_forward.1} parent=1 // pred_region
      _
    $region13: #{mlp_forward.1} parent=1 // pred_fallthru
      _
    // Predicated region
    $region14: #{mlp_forward.1} parent=1 // pred_check
      _
    $region15: #{mlp_forward.1} parent=1 // pred_check_branch
      %30 = sbr.rel (0) target = $region17
    $region16: #{mlp_forward.1} parent=1 // pred_region
      %s32 = ssub.s32 4096, 4096
      %33 = vsyncadd [#allocation6], %s32
      %s34 = sshll.u32 [#allocation5], 4
      %s35 = int_to_ptr.vmem [resolvable:$true] %s34
      %40 = dma.hbm_to_vmem [thread:$0]  %s3, 4096, %s35, [#allocation6], 128, 128, 8
    $region17: #{mlp_forward.1} parent=1 // pred_fallthru
      _
    // Predicated region
    $region18: #{mlp_forward.1} parent=1 // pred_check
      _
    $region19: #{mlp_forward.1} parent=1 // pred_check_branch
      %42 = sbr.rel (0) target = $region21
    $region20: #{mlp_forward.1} parent=1 // pred_region
      _
    $region21: #{mlp_forward.1} parent=1 // pred_fallthru
      _
    // Predicated region
    $region22: #{mlp_forward.1} parent=1 // pred_check
      _
    $region23: #{mlp_forward.1} parent=1 // pred_check_branch
      %44 = sbr.rel (0) target = $region25
    $region24: #{mlp_forward.1} parent=1 // pred_region
      %45 = dma.done [#allocation3], 2048
    $region25: #{mlp_forward.1} parent=1 // pred_fallthru
      _
    // Predicated region
    $region26: #{mlp_forward.1} parent=1 // pred_check
      _
    $region27: #{mlp_forward.1} parent=1 // pred_check_branch
      %47 = sbr.rel (0) target = $region29
    $region28: #{mlp_forward.1} parent=1 // pred_region
      %48 = dma.done [#allocation6], 4096
    $region29: #{mlp_forward.1} parent=1 // pred_fallthru
      _
    %v49 = vld [vmem:[%s0] sm:$0xff]
    %v50 = vld [vmem:[#allocation2] sm:$0xff]
    %v51 = vld [vmem:[#allocation2 + $0x8] sm:$0xff]
    %v52 = vld [vmem:[#allocation2 + $0x10] sm:$0xff]
    %v53 = vld [vmem:[#allocation2 + $0x18] sm:$0xff]
    %v54 = vld [vmem:[#allocation2 + $0x20] sm:$0xff]
    %v55 = vld [vmem:[#allocation2 + $0x28] sm:$0xff]
    %v56 = vld [vmem:[#allocation2 + $0x30] sm:$0xff]
    %v57 = vld [vmem:[#allocation2 + $0x38] sm:$0xff]
    %v58 = vld [vmem:[#allocation2 + $0x40] sm:$0xff]
    %v59 = vld [vmem:[#allocation2 + $0x48] sm:$0xff]
    %v60 = vld [vmem:[#allocation2 + $0x50] sm:$0xff]
    %v61 = vld [vmem:[#allocation2 + $0x58] sm:$0xff]
    %v62 = vld [vmem:[#allocation2 + $0x60] sm:$0xff]
    %v63 = vld [vmem:[#allocation2 + $0x68] sm:$0xff]
    %v64 = vld [vmem:[#allocation2 + $0x70] sm:$0xff]
    %v65 = vld [vmem:[#allocation2 + $0x78] sm:$0xff]
    %v66 = vld [vmem:[%s2] sm:$0x1]
    %v68 = vlaneseq
    %v69 = vshrl.u32 %v68, 7
    %v70 = vsub.s32 0, %v69
    %v71 = vrot.slane %v66, %v70
    %73 = vmatprep.subr.mxu0 0.0
    %74 = vmatpush1.msra.mxu0 %v50
    %75 = vmatprep.subr.mxu0 0.0
    %76 = vmatpush1.msra.mxu0 %v51
    %77 = vmatprep.subr.mxu0 0.0
    %78 = vmatpush1.msra.mxu0 %v52
    %79 = vmatprep.subr.mxu0 0.0
    %80 = vmatpush1.msra.mxu0 %v53
    %81 = vmatprep.subr.mxu0 0.0
    %82 = vmatpush1.msra.mxu0 %v54
    %83 = vmatprep.subr.mxu0 0.0
    %84 = vmatpush1.msra.mxu0 %v55
    %85 = vmatprep.subr.mxu0 0.0
    %86 = vmatpush1.msra.mxu0 %v56
    %87 = vmatprep.subr.mxu0 0.0
    %88 = vmatpush1.msra.mxu0 %v57
    %89 = vmatprep.subr.mxu0 0.0
    %90 = vmatpush1.msra.mxu0 %v58
    %91 = vmatprep.subr.mxu0 0.0
    %92 = vmatpush1.msra.mxu0 %v59
    %93 = vmatprep.subr.mxu0 0.0
    %94 = vmatpush1.msra.mxu0 %v60
    %95 = vmatprep.subr.mxu0 0.0
    %96 = vmatpush1.msra.mxu0 %v61
    %97 = vmatprep.subr.mxu0 0.0
    %98 = vmatpush1.msra.mxu0 %v62
    %99 = vmatprep.subr.mxu0 0.0
    %100 = vmatpush1.msra.mxu0 %v63
    %101 = vmatprep.subr.mxu0 0.0
    %102 = vmatpush1.msra.mxu0 %v64
    %103 = vmatprep.subr.mxu0 0.0
    %104 = vmatpush1.msra.mxu0 %v65
    %105 = vmatprep.subr.mxu0 0.0
    %106 = vmatpush1.msra.mxu0 0.0
    %107 = vmatprep.subr.mxu0 0.0
    %108 = vmatpush1.msra.mxu0 0.0
    %109 = vmatprep.subr.mxu0 0.0
    %110 = vmatpush1.msra.mxu0 0.0
    %111 = vmatprep.subr.mxu0 0.0
    %112 = vmatpush1.msra.mxu0 0.0
    %113 = vmatprep.subr.mxu0 0.0
    %114 = vmatpush1.msra.mxu0 0.0
    %115 = vmatprep.subr.mxu0 0.0
    %116 = vmatpush1.msra.mxu0 0.0
    %117 = vmatprep.subr.mxu0 0.0
    %118 = vmatpush1.msra.mxu0 0.0
    %119 = vmatprep.subr.mxu0 0.0
    %120 = vmatpush1.msra.mxu0 0.0
    %121 = vmatprep.subr.mxu0 0.0
    %122 = vmatpush1.msra.mxu0 0.0
    %123 = vmatprep.subr.mxu0 0.0
    %124 = vmatpush1.msra.mxu0 0.0
    %125 = vmatprep.subr.mxu0 0.0
    %126 = vmatpush1.msra.mxu0 0.0
    %127 = vmatprep.subr.mxu0 0.0
    %128 = vmatpush1.msra.mxu0 0.0
    %129 = vmatprep.subr.mxu0 0.0
    %130 = vmatpush1.msra.mxu0 0.0
    %131 = vmatprep.subr.mxu0 0.0
    %132 = vmatpush1.msra.mxu0 0.0
    %133 = vmatprep.subr.mxu0 0.0
    %134 = vmatpush1.msra.mxu0 0.0
    %135 = vmatprep.subr.mxu0 0.0
    %136 = vmatpush1.msra.mxu0 0.0
    %137 = vmatprep.mubr.f32.mxu0 0.0
    %138 = vmatmul.mubr.f32.gmra.mrb[0].mxu0 %v49
    %v139 = vpop.f32.mrb[0].mxu0
    %v140 = vadd.f32 %v71, %v139
    %v141 = vpop.f32.mrb[0].mxu0
    %142 = vdwg.mxu0
    %v143 = vmax.f32 %v140, 0.0
    %v144 = vld [vmem:[#allocation5] sm:$0xff]
    %v145 = vld [vmem:[#allocation5 + $0x8] sm:$0xff]
    %v146 = vld [vmem:[#allocation5 + $0x10] sm:$0xff]
    %v147 = vld [vmem:[#allocation5 + $0x18] sm:$0xff]
    %v148 = vld [vmem:[#allocation5 + $0x20] sm:$0xff]
    %v149 = vld [vmem:[#allocation5 + $0x28] sm:$0xff]
    %v150 = vld [vmem:[#allocation5 + $0x30] sm:$0xff]
    %v151 = vld [vmem:[#allocation5 + $0x38] sm:$0xff]
    %v152 = vld [vmem:[#allocation5 + $0x40] sm:$0xff]
    %v153 = vld [vmem:[#allocation5 + $0x48] sm:$0xff]
    %v154 = vld [vmem:[#allocation5 + $0x50] sm:$0xff]
    %v155 = vld [vmem:[#allocation5 + $0x58] sm:$0xff]
    %v156 = vld [vmem:[#allocation5 + $0x60] sm:$0xff]
    %v157 = vld [vmem:[#allocation5 + $0x68] sm:$0xff]
    %v158 = vld [vmem:[#allocation5 + $0x70] sm:$0xff]
    %v159 = vld [vmem:[#allocation5 + $0x78] sm:$0xff]
    %v160 = vld [vmem:[%s4] sm:$0x1]
    %v162 = vlaneseq
    %v163 = vshrl.u32 %v162, 7
    %v164 = vsub.s32 0, %v163
    %v165 = vrot.slane %v160, %v164
    %167 = vmatprep.subr.mxu0 0.0
    %168 = vmatpush1.msra.mxu0 %v144
    %169 = vmatprep.subr.mxu0 0.0
    %170 = vmatpush1.msra.mxu0 %v145
    %171 = vmatprep.subr.mxu0 0.0
    %172 = vmatpush1.msra.mxu0 %v146
    %173 = vmatprep.subr.mxu0 0.0
    %174 = vmatpush1.msra.mxu0 %v147
    %175 = vmatprep.subr.mxu0 0.0
    %176 = vmatpush1.msra.mxu0 %v148
    %177 = vmatprep.subr.mxu0 0.0
    %178 = vmatpush1.msra.mxu0 %v149
    %179 = vmatprep.subr.mxu0 0.0
    %180 = vmatpush1.msra.mxu0 %v150
    %181 = vmatprep.subr.mxu0 0.0
    %182 = vmatpush1.msra.mxu0 %v151
    %183 = vmatprep.subr.mxu0 0.0
    %184 = vmatpush1.msra.mxu0 %v152
    %185 = vmatprep.subr.mxu0 0.0
    %186 = vmatpush1.msra.mxu0 %v153
    %187 = vmatprep.subr.mxu0 0.0
    %188 = vmatpush1.msra.mxu0 %v154
    %189 = vmatprep.subr.mxu0 0.0
    %190 = vmatpush1.msra.mxu0 %v155
    %191 = vmatprep.subr.mxu0 0.0
    %192 = vmatpush1.msra.mxu0 %v156
    %193 = vmatprep.subr.mxu0 0.0
    %194 = vmatpush1.msra.mxu0 %v157
    %195 = vmatprep.subr.mxu0 0.0
    %196 = vmatpush1.msra.mxu0 %v158
    %197 = vmatprep.subr.mxu0 0.0
    %198 = vmatpush1.msra.mxu0 %v159
    %199 = vmatprep.subr.mxu0 0.0
    %200 = vmatpush1.msra.mxu0 0.0
    %201 = vmatprep.subr.mxu0 0.0
    %202 = vmatpush1.msra.mxu0 0.0
    %203 = vmatprep.subr.mxu0 0.0
    %204 = vmatpush1.msra.mxu0 0.0
    %205 = vmatprep.subr.mxu0 0.0
    %206 = vmatpush1.msra.mxu0 0.0
    %207 = vmatprep.subr.mxu0 0.0
    %208 = vmatpush1.msra.mxu0 0.0
    %209 = vmatprep.subr.mxu0 0.0
    %210 = vmatpush1.msra.mxu0 0.0
    %211 = vmatprep.subr.mxu0 0.0
    %212 = vmatpush1.msra.mxu0 0.0
    %213 = vmatprep.subr.mxu0 0.0
    %214 = vmatpush1.msra.mxu0 0.0
    %215 = vmatprep.subr.mxu0 0.0
    %216 = vmatpush1.msra.mxu0 0.0
    %217 = vmatprep.subr.mxu0 0.0
    %218 = vmatpush1.msra.mxu0 0.0
    %219 = vmatprep.subr.mxu0 0.0
    %220 = vmatpush1.msra.mxu0 0.0
    %221 = vmatprep.subr.mxu0 0.0
    %222 = vmatpush1.msra.mxu0 0.0
    %223 = vmatprep.subr.mxu0 0.0
    %224 = vmatpush1.msra.mxu0 0.0
    %225 = vmatprep.subr.mxu0 0.0
    %226 = vmatpush1.msra.mxu0 0.0
    %227 = vmatprep.subr.mxu0 0.0
    %228 = vmatpush1.msra.mxu0 0.0
    %229 = vmatprep.subr.mxu0 0.0
    %230 = vmatpush1.msra.mxu0 0.0
    %231 = vmatprep.mubr.f32.mxu0 0.0
    %232 = vmatmul.mubr.f32.gmra.mrb[0].mxu0 %v143
    %v233 = vpop.f32.mrb[0].mxu0
    %v234 = vadd.f32 %v165, %v233
    %v235 = vpop.f32.mrb[0].mxu0
    %236 = vdwg.mxu0
    %v237 = vmax.f32 %v234, 0.0
    %s238 = scalar_lea.vmem [#allocation5], 128
    %v239 = vld [vmem:[%s238] sm:$0xff]
    %v240 = vld [vmem:[%s238 + $0x8] sm:$0xff]
    %v241 = vld [vmem:[%s238 + $0x10] sm:$0xff]
    %v242 = vld [vmem:[%s238 + $0x18] sm:$0xff]
    %v243 = vld [vmem:[%s238 + $0x20] sm:$0xff]
    %v244 = vld [vmem:[%s238 + $0x28] sm:$0xff]
    %v245 = vld [vmem:[%s238 + $0x30] sm:$0xff]
    %v246 = vld [vmem:[%s238 + $0x38] sm:$0xff]
    %v247 = vld [vmem:[%s238 + $0x40] sm:$0xff]
    %v248 = vld [vmem:[%s238 + $0x48] sm:$0xff]
    %v249 = vld [vmem:[%s238 + $0x50] sm:$0xff]
    %v250 = vld [vmem:[%s238 + $0x58] sm:$0xff]
    %v251 = vld [vmem:[%s238 + $0x60] sm:$0xff]
    %v252 = vld [vmem:[%s238 + $0x68] sm:$0xff]
    %v253 = vld [vmem:[%s238 + $0x70] sm:$0xff]
    %v254 = vld [vmem:[%s238 + $0x78] sm:$0xff]
    %s255 = scalar_lea.vmem %s4, 1
    %v256 = vld [vmem:[%s255] sm:$0x1]
    %v258 = vlaneseq
    %v259 = vshrl.u32 %v258, 7
    %v260 = vsub.s32 0, %v259
    %v261 = vrot.slane %v256, %v260
    %263 = vmatprep.subr.mxu0 0.0
    %264 = vmatpush1.msra.mxu0 %v239
    %265 = vmatprep.subr.mxu0 0.0
    %266 = vmatpush1.msra.mxu0 %v240
    %267 = vmatprep.subr.mxu0 0.0
    %268 = vmatpush1.msra.mxu0 %v241
    %269 = vmatprep.subr.mxu0 0.0
    %270 = vmatpush1.msra.mxu0 %v242
    %271 = vmatprep.subr.mxu0 0.0
    %272 = vmatpush1.msra.mxu0 %v243
    %273 = vmatprep.subr.mxu0 0.0
    %274 = vmatpush1.msra.mxu0 %v244
    %275 = vmatprep.subr.mxu0 0.0
    %276 = vmatpush1.msra.mxu0 %v245
    %277 = vmatprep.subr.mxu0 0.0
    %278 = vmatpush1.msra.mxu0 %v246
    %279 = vmatprep.subr.mxu0 0.0
    %280 = vmatpush1.msra.mxu0 %v247
    %281 = vmatprep.subr.mxu0 0.0
    %282 = vmatpush1.msra.mxu0 %v248
    %283 = vmatprep.subr.mxu0 0.0
    %284 = vmatpush1.msra.mxu0 %v249
    %285 = vmatprep.subr.mxu0 0.0
    %286 = vmatpush1.msra.mxu0 %v250
    %287 = vmatprep.subr.mxu0 0.0
    %288 = vmatpush1.msra.mxu0 %v251
    %289 = vmatprep.subr.mxu0 0.0
    %290 = vmatpush1.msra.mxu0 %v252
    %291 = vmatprep.subr.mxu0 0.0
    %292 = vmatpush1.msra.mxu0 %v253
    %293 = vmatprep.subr.mxu0 0.0
    %294 = vmatpush1.msra.mxu0 %v254
    %295 = vmatprep.subr.mxu0 0.0
    %296 = vmatpush1.msra.mxu0 0.0
    %297 = vmatprep.subr.mxu0 0.0
    %298 = vmatpush1.msra.mxu0 0.0
    %299 = vmatprep.subr.mxu0 0.0
    %300 = vmatpush1.msra.mxu0 0.0
    %301 = vmatprep.subr.mxu0 0.0
    %302 = vmatpush1.msra.mxu0 0.0
    %303 = vmatprep.subr.mxu0 0.0
    %304 = vmatpush1.msra.mxu0 0.0
    %305 = vmatprep.subr.mxu0 0.0
    %306 = vmatpush1.msra.mxu0 0.0
    %307 = vmatprep.subr.mxu0 0.0
    %308 = vmatpush1.msra.mxu0 0.0
    %309 = vmatprep.subr.mxu0 0.0
    %310 = vmatpush1.msra.mxu0 0.0
    %311 = vmatprep.subr.mxu0 0.0
    %312 = vmatpush1.msra.mxu0 0.0
    %313 = vmatprep.subr.mxu0 0.0
    %314 = vmatpush1.msra.mxu0 0.0
    %315 = vmatprep.subr.mxu0 0.0
    %316 = vmatpush1.msra.mxu0 0.0
    %317 = vmatprep.subr.mxu0 0.0
    %318 = vmatpush1.msra.mxu0 0.0
    %319 = vmatprep.subr.mxu0 0.0
    %320 = vmatpush1.msra.mxu0 0.0
    %321 = vmatprep.subr.mxu0 0.0
    %322 = vmatpush1.msra.mxu0 0.0
    %323 = vmatprep.subr.mxu0 0.0
    %324 = vmatpush1.msra.mxu0 0.0
    %325 = vmatprep.subr.mxu0 0.0
    %326 = vmatpush1.msra.mxu0 0.0
    %327 = vmatprep.mubr.f32.mxu0 0.0
    %328 = vmatmul.mubr.f32.gmra.mrb[0].mxu0 %v237
    %v329 = vpop.f32.mrb[0].mxu0
    %v330 = vadd.f32 %v261, %v329
    %v331 = vpop.f32.mrb[0].mxu0
    %332 = vdwg.mxu0
    %v333 = vmax.f32 %v330, 0.0
    %334 = vst [vmem:[#allocation7] sm:$0xff] %v333
    // Predicated region
    $region30: #{mlp_forward.1} parent=1 // pred_check
      _
    $region31: #{mlp_forward.1} parent=1 // pred_check_branch
      %336 = sbr.rel (0) target = $region33
    $region32: #{mlp_forward.1} parent=1 // pred_region
      %s338 = ssub.s32 128, 128
      %339 = vsyncadd [#allocation4], %s338
      %s341 = sshll.u32 [#allocation7], 4
      %s342 = int_to_ptr.vmem [resolvable:$true] %s341
      %344 = dma.vmem_to_hbm [thread:$0]  %s342, 128, %s5, [#allocation4]
    $region33: #{mlp_forward.1} parent=1 // pred_fallthru
      _
    // Predicated region
    $region34: #{mlp_forward.1} parent=1 // pred_check
      _
    $region35: #{mlp_forward.1} parent=1 // pred_check_branch
      %346 = sbr.rel (0) target = $region37
    $region36: #{mlp_forward.1} parent=1 // pred_region
      %347 = dma.done [#allocation4], 128
    $region37: #{mlp_forward.1} parent=1 // pred_fallthru
      _
    %348 = vsyncpa [#allocation3], 1
    %349 = vsyncpa [#allocation6], 1
    %350 = vsyncpa [#allocation4], 1

</llo_original>
